<compile_context>
chip_gen: v7x
topology: tpu7x:2x2x1
jax: 0.10.0
libtpu: 0.0.40
codegen_flags: <defaults>
</compile_context>

<pallas_src>
import jax
import jax.numpy as jnp
from jax.experimental import pallas as pl
from jax.experimental.pallas import tpu as pltpu

_LANES = 384          # 3 features * 128 rows per flat row (multiple of 128 lanes)
_ROWS_PER = _LANES // 3


def _round_up(x, m):
    return ((x + m - 1) // m) * m


def _choose_tile_rows(m, tile_m):
    """Rows of the (m, 384) flat view processed per grid step."""
    tile_m = max(8, _round_up(tile_m, 8))
    if m <= tile_m:
        if m >= 16:
            # Keep at least 2 grid steps so dual-TC chips (v7x) can split the
            # "parallel" grid axis across both TensorCores.
            return min(_round_up(-(-m // 2), 8), m)
        return m                       # single full block (block dim == array dim)
    return tile_m


def _coeff_table(weight, bias, dtype):
    """(8, 384) table: rows 0..4 = coeffs for shifts -2..+2, row 5 = bias."""
    f = jnp.arange(_LANES) % 3                       # feature phase per lane
    rows = []
    for s in (-2, -1, 0, 1, 2):
        k = f + s
        coeff = jnp.where((k >= 0) & (k <= 2),
                          weight[f, jnp.clip(k, 0, 2)],
                          jnp.zeros((), weight.dtype))
        rows.append(coeff)
    rows.append(bias[f])
    zero = jnp.zeros((_LANES,), weight.dtype)
    rows.extend([zero, zero])                        # pad to 8 sublanes
    return jnp.stack(rows).astype(dtype)             # (8, 384)


def _linear_flat_kernel(tab_ref, x_ref, o_ref):
    """Lane-dense Linear(3,3) on the flat view.

    tab_ref : (8, 384)  coefficient table (VMEM, resident across the grid)
    x_ref   : (tm, 384) flat activations; lane l holds feature l%3 of row l//3
    o_ref   : (tm, 384) flat outputs, same layout
    """
    x = x_ref[...]                                   # (tm, 384)
    c = x.shape[-1]
    # shift s = 0 contribution + bias (both broadcast over sublanes)
    acc = x * tab_ref[2:3, :] + tab_ref[5:6, :]
    # shifts s in {-2,-1,+1,+2}: xs[r, l] = x[r, (l + s) mod c]; wrap-around
    # only touches lanes whose coefficient is exactly zero.
    for row, s in ((0, -2), (1, -1), (3, 1), (4, 2)):
        xs = pltpu.roll(x, shift=(-s) % c, axis=1)
        acc = acc + xs * tab_ref[row:row + 1, :]
    o_ref[...] = acc.astype(o_ref.dtype)             # one unmasked lane-dense store


def block2_forward(x, weight, bias, *, tile_m=2048):
    """y = x @ W^T + b  (torch.nn.Linear(3, 3) forward).

    x: (..., 3), weight: (3, 3) in torch [out, in] layout, bias: (3,).
    """
    assert x.shape[-1] == 3 and weight.shape == (3, 3) and bias.shape == (3,)
    dtype = x.dtype
    orig_shape = x.shape
    itemsize = jnp.dtype(dtype).itemsize

    x2 = x.reshape(-1, 3)
    n = x2.shape[0]
    n_main = (n // _ROWS_PER) * _ROWS_PER            # rows handled by the kernel

    pieces = []
    if n_main > 0:
        m = n_main // _ROWS_PER                      # flat rows of width 384
        tm = _choose_tile_rows(m, tile_m)
        grid = (pl.cdiv(m, tm),)                     # ragged last block is fine:
                                                     # OOB reads never feed valid
                                                     # rows; OOB writes are dropped
        table = _coeff_table(weight, bias, dtype)
        xv = x2[:n_main].reshape(m, _LANES)          # contiguous re-view, no transpose

        yv = pl.pallas_call(
            _linear_flat_kernel,
            out_shape=jax.ShapeDtypeStruct((m, _LANES), dtype),
            grid=grid,
            in_specs=[
                # Tiny coefficient table: constant block index -> DMA'd once,
                # stays resident in VMEM for the whole grid.
                pl.BlockSpec((8, _LANES), lambda i: (0, 0)),
                # Activations tiled along the flat-row (sublane) axis; last dim
                # is a lane-dense multiple of 128.  Default double buffering is
                # enough (per-step DMA >> pipeline overhead at this tile size).
                pl.BlockSpec((tm, _LANES), lambda i: (i, 0)),
            ],
            out_specs=pl.BlockSpec((tm, _LANES), lambda i: (i, 0)),
            compiler_params=pltpu.CompilerParams(
                dimension_semantics=("parallel",),
                vmem_limit_bytes=32 * 1024 * 1024),
            cost_estimate=pl.CostEstimate(
                flops=2 * 3 * 3 * n_main,
                transcendentals=0,
                bytes_accessed=itemsize * (2 * 3 * n_main + 8 * _LANES)),
        )(table, xv)
        pieces.append(yv.reshape(n_main, 3))

    if n_main < n:
        # <=127 leftover rows: exact-f32 broadcast/multiply/sum on the VPU path
        # of XLA (avoids any MXU precision surprises); negligible work.
        x_tail = x2[n_main:]
        y_tail = (x_tail[:, None, :] * weight[None, :, :]).sum(-1) + bias
        pieces.append(y_tail.astype(dtype))

    y2 = pieces[0] if len(pieces) == 1 else jnp.concatenate(pieces, axis=0)
    return y2.reshape(orig_shape)


if __name__ == "__main__":
    key = jax.random.PRNGKey(0)
    kx1, kx2, kx3, kw, kb = jax.random.split(key, 5)

    # Deterministic params mimicking torch.nn.Linear default init:
    # uniform(-1/sqrt(fan_in), 1/sqrt(fan_in)) with fan_in = 3.
    bound = 3.0 ** -0.5
    weight = jax.random.uniform(kw, (3, 3), jnp.float32, -bound, bound)  # [out, in]
    bias = jax.random.uniform(kb, (3,), jnp.float32, -bound, bound)

    def ref(xx):  # exact-f32 reference (no MXU precision ambiguity)
        return (xx[:, None, :] * weight[None, :, :]).sum(-1) + bias

    # 1) Tiny module-sized batch (8 rows): handled by the exact JAX tail path.
    x_small = jax.random.normal(kx1, (8, 3), jnp.float32)
    y_small = jax.block_until_ready(block2_forward(x_small, weight, bias))
    assert jnp.allclose(y_small, ref(x_small), atol=1e-5, rtol=1e-5)

    # 2) Aligned batch: pure Pallas path, single block.
    x_mid = jax.random.normal(kx2, (512, 3), jnp.float32)
    y_mid = jax.block_until_ready(block2_forward(x_mid, weight, bias))
    assert jnp.allclose(y_mid, ref(x_mid), atol=1e-5, rtol=1e-5)

    # 3) Aligned batch forcing a multi-step grid with a ragged last block.
    x_grid = jax.random.normal(kx3, (5120, 3), jnp.float32)
    y_grid = jax.block_until_ready(block2_forward(x_grid, weight, bias))
    assert jnp.allclose(y_grid, ref(x_grid), atol=1e-5, rtol=1e-5)

    # 4) Unaligned batch: Pallas kernel for the bulk + tiny JAX tail.
    x_rag = jax.random.normal(kx1, (1000, 3), jnp.float32)
    y_rag = jax.block_until_ready(block2_forward(x_rag, weight, bias))
    assert jnp.allclose(y_rag, ref(x_rag), atol=1e-5, rtol=1e-5)

    print("KERNEL_OK")
</pallas_src>

<mosaic_0001>
module attributes {stable_mosaic.version = 11 : i64} {
  func.func @_linear_flat_kernel(%arg0: i32, %arg1: memref<8x384xf32, #tpu.memory_space<vmem>>, %arg2: memref<4x384xf32, #tpu.memory_space<vmem>>, %arg3: memref<4x384xf32, #tpu.memory_space<vmem>>) attributes {dimension_semantics = [#tpu.dimension_semantics<parallel>], iteration_bounds = array<i64: 1>, scalar_prefetch = 0 : i64, scratch_operands = 0 : i64, tpu.core_type = #tpu.core_type<tc>, window_params = [{pipeline_mode = #tpu.pipeline_mode<synchronous>, transform_indices = @transform_0, window_bounds = array<i64: 8, 384>}, {transform_indices = @transform_1, window_bounds = array<i64: 4, 384>}, {transform_indices = @transform_2, window_bounds = array<i64: 4, 384>}]} {
    %c0 = arith.constant 0 : index
    %c0_0 = arith.constant 0 : index
    %0 = vector.load %arg2[%c0, %c0_0] : memref<4x384xf32, #tpu.memory_space<vmem>>, vector<4x384xf32>
    %c2 = arith.constant 2 : index
    %c0_1 = arith.constant 0 : index
    %1 = vector.load %arg1[%c2, %c0_1] : memref<8x384xf32, #tpu.memory_space<vmem>>, vector<1x384xf32>
    %2 = vector.broadcast %1 : vector<1x384xf32> to vector<4x384xf32>
    %3 = arith.mulf %0, %2 : vector<4x384xf32>
    %c5 = arith.constant 5 : index
    %c0_2 = arith.constant 0 : index
    %4 = vector.load %arg1[%c5, %c0_2] : memref<8x384xf32, #tpu.memory_space<vmem>>, vector<1x384xf32>
    %5 = vector.broadcast %4 : vector<1x384xf32> to vector<4x384xf32>
    %6 = arith.addf %3, %5 : vector<4x384xf32>
    %c2_i32 = arith.constant 2 : i32
    %7 = tpu.dynamic_rotate %0 by %c2_i32 dim 1 : vector<4x384xf32>, i32 -> vector<4x384xf32>
    %c0_3 = arith.constant 0 : index
    %c0_4 = arith.constant 0 : index
    %8 = vector.load %arg1[%c0_3, %c0_4] : memref<8x384xf32, #tpu.memory_space<vmem>>, vector<1x384xf32>
    %9 = vector.broadcast %8 : vector<1x384xf32> to vector<4x384xf32>
    %10 = arith.mulf %7, %9 : vector<4x384xf32>
    %11 = arith.addf %6, %10 : vector<4x384xf32>
    %c1_i32 = arith.constant 1 : i32
    %12 = tpu.dynamic_rotate %0 by %c1_i32 dim 1 : vector<4x384xf32>, i32 -> vector<4x384xf32>
    %c1 = arith.constant 1 : index
    %c0_5 = arith.constant 0 : index
    %13 = vector.load %arg1[%c1, %c0_5] : memref<8x384xf32, #tpu.memory_space<vmem>>, vector<1x384xf32>
    %14 = vector.broadcast %13 : vector<1x384xf32> to vector<4x384xf32>
    %15 = arith.mulf %12, %14 : vector<4x384xf32>
    %16 = arith.addf %11, %15 : vector<4x384xf32>
    %c383_i32 = arith.constant 383 : i32
    %17 = tpu.dynamic_rotate %0 by %c383_i32 dim 1 : vector<4x384xf32>, i32 -> vector<4x384xf32>
    %c3 = arith.constant 3 : index
    %c0_6 = arith.constant 0 : index
    %18 = vector.load %arg1[%c3, %c0_6] : memref<8x384xf32, #tpu.memory_space<vmem>>, vector<1x384xf32>
    %19 = vector.broadcast %18 : vector<1x384xf32> to vector<4x384xf32>
    %20 = arith.mulf %17, %19 : vector<4x384xf32>
    %21 = arith.addf %16, %20 : vector<4x384xf32>
    %c382_i32 = arith.constant 382 : i32
    %22 = tpu.dynamic_rotate %0 by %c382_i32 dim 1 : vector<4x384xf32>, i32 -> vector<4x384xf32>
    %c4 = arith.constant 4 : index
    %c0_7 = arith.constant 0 : index
    %23 = vector.load %arg1[%c4, %c0_7] : memref<8x384xf32, #tpu.memory_space<vmem>>, vector<1x384xf32>
    %24 = vector.broadcast %23 : vector<1x384xf32> to vector<4x384xf32>
    %25 = arith.mulf %22, %24 : vector<4x384xf32>
    %26 = arith.addf %21, %25 : vector<4x384xf32>
    %c0_8 = arith.constant 0 : index
    %c0_9 = arith.constant 0 : index
    %27 = vector.load %arg3[%c0_8, %c0_9] : memref<4x384xf32, #tpu.memory_space<vmem>>, vector<4x384xf32>
    tpu.vector_store %arg3[%c0_8, %c0_9], %26 {strides = array<i32>} : memref<4x384xf32, #tpu.memory_space<vmem>>, vector<4x384xf32>,
    return
  }
  func.func @transform_0(%arg0: i32) -> (i32, i32) {
    %c0_i32 = arith.constant 0 : i32
    %c0_i32_0 = arith.constant 0 : i32
    %c0_i32_1 = arith.constant 0 : i32
    return %c0_i32, %c0_i32_0 : i32, i32
  }
  func.func @transform_1(%arg0: i32) -> (i32, i32) {
    %c0_i32 = arith.constant 0 : i32
    %c0_i32_0 = arith.constant 0 : i32
    return %arg0, %c0_i32 : i32, i32
  }
  func.func @transform_2(%arg0: i32) -> (i32, i32) {
    %c0_i32 = arith.constant 0 : i32
    %c0_i32_0 = arith.constant 0 : i32
    return %arg0, %c0_i32 : i32, i32
  }
}

</mosaic_0001>

<llo_original>
// kernel: tpu_custom_call.1
$region0: #{tpu_custom_call.1}
  #allocation0 [shape = 'u32[]', space=smem, size = 0x4, offset = 0x4, fixed_abs, tag = 'smem constant byte address 0x4 - core index']
  #allocation1 [shape = 'u32[144,128]{1,0:T(1,128)}', space=vmem, size = 0x12000, scoped, tag = 'internal scratch']
  %s0 = inlined_call_operand.hbm [shape: f32[8,384], index: 0, kind: input, shape index: {}]
  %s1 = inlined_call_operand.hbm [shape: f32[4,384], index: 1, kind: input, shape index: {}]
  %s2 = inlined_call_operand.hbm [shape: f32[4,384], index: 2, kind: output, shape index: {}]
  %s3 = sld [smem:[#allocation0]]
  $region26: #{tpu_custom_call.1} parent=0
    _
  %s5 = ssub.s32 1, %s3
  %s6 = scalar_select 0, %s5, %s3
  $region1: #{tpu_custom_call.1} parent=0
    #allocation2 [shape = 'u8[12288]{0}', space=vmem, size = 0x3000, scoped, tag = 'input window, operand 0, single buffered']
    #allocation3 [shape = 's32[1]{0}', space=sflag, size = 0x4, scoped, tag = 'scoped memory for tpu_custom_call.1']
    #allocation4 [shape = 's32[1]{0}', space=sflag, size = 0x4, scoped, tag = 'scoped memory for tpu_custom_call.1']
    #allocation5 [shape = 'u8[6144]{0}', space=vmem, size = 0x1800, scoped, tag = 'input window, operand 1, single buffered']
    #allocation6 [shape = 's32[1]{0}', space=sflag, size = 0x4, scoped, tag = 'scoped memory for tpu_custom_call.1']
    #allocation7 [shape = 'u8[6144]{0}', space=vmem, size = 0x1800, scoped, tag = 'output window, operand 0, single buffered']
    %7 = vsyncpa [#allocation3], 0
    %8 = vsyncpa [#allocation6], 0
    %9 = vsyncpa [#allocation4], 0
    // Predicated region
    $region2: #{tpu_custom_call.1} parent=1 // pred_check
      _
    $region3: #{tpu_custom_call.1} parent=1 // pred_check_branch
      %11 = sbr.rel (0) target = $region5
    $region4: #{tpu_custom_call.1} parent=1 // pred_region
      %s13 = ssub.s32 384, 384
      %14 = vsyncadd [#allocation3], %s13
      %s16 = sshll.u32 [#allocation2], 4
      %s17 = int_to_ptr.vmem [resolvable:$true] %s16
      %19 = dma.hbm_to_vmem [thread:$0]  %s0, 384, %s17, [#allocation3]
    $region5: #{tpu_custom_call.1} parent=1 // pred_fallthru
      _
    // Predicated region
    $region6: #{tpu_custom_call.1} parent=1 // pred_check
      _
    $region7: #{tpu_custom_call.1} parent=1 // pred_check_branch
      %21 = sbr.rel (0) target = $region9
    $region8: #{tpu_custom_call.1} parent=1 // pred_region
      %s23 = ssub.s32 192, 192
      %24 = vsyncadd [#allocation6], %s23
      %s26 = sshll.u32 [#allocation5], 4
      %s27 = int_to_ptr.vmem [resolvable:$true] %s26
      %29 = dma.hbm_to_vmem [thread:$0]  %s1, 192, %s27, [#allocation6]
    $region9: #{tpu_custom_call.1} parent=1 // pred_fallthru
      _
    // Predicated region
    $region10: #{tpu_custom_call.1} parent=1 // pred_check
      _
    $region11: #{tpu_custom_call.1} parent=1 // pred_check_branch
      %31 = sbr.rel (0) target = $region13
    $region12: #{tpu_custom_call.1} parent=1 // pred_region
      %32 = dma.done [#allocation3], 384
    $region13: #{tpu_custom_call.1} parent=1 // pred_fallthru
      _
    // Predicated region
    $region14: #{tpu_custom_call.1} parent=1 // pred_check
      _
    $region15: #{tpu_custom_call.1} parent=1 // pred_check_branch
      %34 = sbr.rel (0) target = $region17
    $region16: #{tpu_custom_call.1} parent=1 // pred_region
      %35 = dma.done [#allocation6], 192
    $region17: #{tpu_custom_call.1} parent=1 // pred_fallthru
      _
    %v36 = vld [vmem:[#allocation5] sm:$0xff]
    %v37 = vld [vmem:[#allocation5 + $0x8] sm:$0xf]
    %s38 = scalar_lea.vmem [#allocation2], 2
    %v39 = vld [vmem:[%s38] ss:$8 sm:$0x7]
    %v41 = vlaneseq
    %v42 = vshrl.u32 %v41, 7
    %v43 = vsub.s32 0, %v42
    %v44 = vrot.slane %v39, %v43
    %v45 = vlaneseq
    %v46 = vshrl.u32 %v45, 7
    %v47 = vsub.s32 1, %v46
    %v48 = vrot.slane %v39, %v47
    %v49 = vlaneseq
    %v50 = vshrl.u32 %v49, 7
    %v51 = vsub.s32 2, %v50
    %v52 = vrot.slane %v39, %v51
    %v54 = vcombine.low %v44, %v48
    %v56 = vmul.f32 %v36, %v54
    %v57 = vmul.f32 %v37, %v52
    %s58 = scalar_lea.vmem [#allocation2], 5
    %v59 = vld [vmem:[%s58] ss:$8 sm:$0x7]
    %v61 = vlaneseq
    %v62 = vshrl.u32 %v61, 7
    %v63 = vsub.s32 0, %v62
    %v64 = vrot.slane %v59, %v63
    %v65 = vlaneseq
    %v66 = vshrl.u32 %v65, 7
    %v67 = vsub.s32 1, %v66
    %v68 = vrot.slane %v59, %v67
    %v69 = vlaneseq
    %v70 = vshrl.u32 %v69, 7
    %v71 = vsub.s32 2, %v70
    %v72 = vrot.slane %v59, %v71
    %v74 = vcombine.low %v64, %v68
    %v76 = vadd.f32 %v56, %v74
    %v77 = vadd.f32 %v57, %v72
    %v79 = vcombine.high %v36, %v36
    %81 = vrot.lane.b32.xlu0 %v36, 2
    %v82 = vpop.permute.xlu0 %81
    %83 = vrot.lane.b32.xlu0 %v79, 2
    %v84 = vpop.permute.xlu0 %83
    %85 = vrot.lane.b32.xlu0 %v37, 2
    %v86 = vpop.permute.xlu0 %85
    %v87 = vlaneseq
    %v88 = vand.u32 %v87, 127
    %vm89 = vcmp.lt.s32.totalorder %v88, 2
    %v90 = vsel %vm89, %v84, %v86
    %v91 = vsel %vm89, %v82, %v84
    %v92 = vsel %vm89, %v86, %v82
    %v93 = vld [vmem:[#allocation2] ss:$8 sm:$0x7]
    %v95 = vlaneseq
    %v96 = vshrl.u32 %v95, 7
    %v97 = vsub.s32 0, %v96
    %v98 = vrot.slane %v93, %v97
    %v99 = vlaneseq
    %v100 = vshrl.u32 %v99, 7
    %v101 = vsub.s32 1, %v100
    %v102 = vrot.slane %v93, %v101
    %v103 = vlaneseq
    %v104 = vshrl.u32 %v103, 7
    %v105 = vsub.s32 2, %v104
    %v106 = vrot.slane %v93, %v105
    %v110 = vmul.f32 %v92, %v98
    %v111 = vmul.f32 %v91, %v102
    %v112 = vmul.f32 %v90, %v106
    %v115 = vcombine.low %v110, %v111
    %v117 = vadd.f32 %v76, %v115
    %v118 = vadd.f32 %v77, %v112
    %119 = vrot.lane.b32.xlu0 %v36, 1
    %v120 = vpop.permute.xlu0 %119
    %121 = vrot.lane.b32.xlu0 %v79, 1
    %v122 = vpop.permute.xlu0 %121
    %123 = vrot.lane.b32.xlu0 %v37, 1
    %v124 = vpop.permute.xlu0 %123
    %vm125 = vcmp.lt.s32.totalorder %v88, 1
    %v126 = vsel %vm125, %v122, %v124
    %v127 = vsel %vm125, %v120, %v122
    %v128 = vsel %vm125, %v124, %v120
    %s129 = scalar_lea.vmem [#allocation2], 1
    %v130 = vld [vmem:[%s129] ss:$8 sm:$0x7]
    %v132 = vlaneseq
    %v133 = vshrl.u32 %v132, 7
    %v134 = vsub.s32 0, %v133
    %v135 = vrot.slane %v130, %v134
    %v136 = vlaneseq
    %v137 = vshrl.u32 %v136, 7
    %v138 = vsub.s32 1, %v137
    %v139 = vrot.slane %v130, %v138
    %v140 = vlaneseq
    %v141 = vshrl.u32 %v140, 7
    %v142 = vsub.s32 2, %v141
    %v143 = vrot.slane %v130, %v142
    %v147 = vmul.f32 %v128, %v135
    %v148 = vmul.f32 %v127, %v139
    %v149 = vmul.f32 %v126, %v143
    %v152 = vcombine.low %v147, %v148
    %v154 = vadd.f32 %v117, %v152
    %v155 = vadd.f32 %v118, %v149
    %156 = vrot.lane.b32.xlu0 %v36, 127
    %v157 = vpop.permute.xlu0 %156
    %158 = vrot.lane.b32.xlu0 %v79, 127
    %v159 = vpop.permute.xlu0 %158
    %160 = vrot.lane.b32.xlu0 %v37, 127
    %v161 = vpop.permute.xlu0 %160
    %vm162 = vcmp.lt.s32.totalorder %v88, 127
    %v163 = vsel %vm162, %v159, %v161
    %v164 = vsel %vm162, %v157, %v159
    %v165 = vsel %vm162, %v161, %v157
    %s166 = scalar_lea.vmem [#allocation2], 3
    %v167 = vld [vmem:[%s166] ss:$8 sm:$0x7]
    %v169 = vlaneseq
    %v170 = vshrl.u32 %v169, 7
    %v171 = vsub.s32 0, %v170
    %v172 = vrot.slane %v167, %v171
    %v173 = vlaneseq
    %v174 = vshrl.u32 %v173, 7
    %v175 = vsub.s32 1, %v174
    %v176 = vrot.slane %v167, %v175
    %v177 = vlaneseq
    %v178 = vshrl.u32 %v177, 7
    %v179 = vsub.s32 2, %v178
    %v180 = vrot.slane %v167, %v179
    %v184 = vmul.f32 %v164, %v172
    %v185 = vmul.f32 %v163, %v176
    %v186 = vmul.f32 %v165, %v180
    %v189 = vcombine.low %v184, %v185
    %v191 = vadd.f32 %v154, %v189
    %v192 = vadd.f32 %v155, %v186
    %193 = vrot.lane.b32.xlu0 %v36, 126
    %v194 = vpop.permute.xlu0 %193
    %195 = vrot.lane.b32.xlu0 %v79, 126
    %v196 = vpop.permute.xlu0 %195
    %197 = vrot.lane.b32.xlu0 %v37, 126
    %v198 = vpop.permute.xlu0 %197
    %vm199 = vcmp.lt.s32.totalorder %v88, 126
    %v200 = vsel %vm199, %v196, %v198
    %v201 = vsel %vm199, %v194, %v196
    %v202 = vsel %vm199, %v198, %v194
    %s203 = scalar_lea.vmem [#allocation2], 4
    %v204 = vld [vmem:[%s203] ss:$8 sm:$0x7]
    %v206 = vlaneseq
    %v207 = vshrl.u32 %v206, 7
    %v208 = vsub.s32 0, %v207
    %v209 = vrot.slane %v204, %v208
    %v210 = vlaneseq
    %v211 = vshrl.u32 %v210, 7
    %v212 = vsub.s32 1, %v211
    %v213 = vrot.slane %v204, %v212
    %v214 = vlaneseq
    %v215 = vshrl.u32 %v214, 7
    %v216 = vsub.s32 2, %v215
    %v217 = vrot.slane %v204, %v216
    %v221 = vmul.f32 %v201, %v209
    %v222 = vmul.f32 %v200, %v213
    %v223 = vmul.f32 %v202, %v217
    %v226 = vcombine.low %v221, %v222
    %v228 = vadd.f32 %v191, %v226
    %v229 = vadd.f32 %v192, %v223
    %230 = vst [vmem:[#allocation7] sm:$0xff] %v228
    %231 = vst [vmem:[#allocation7 + $0x8] sm:$0xf] %v229
    // Predicated region
    $region18: #{tpu_custom_call.1} parent=1 // pred_check
      _
    $region19: #{tpu_custom_call.1} parent=1 // pred_check_branch
      %233 = sbr.rel (0) target = $region21
    $region20: #{tpu_custom_call.1} parent=1 // pred_region
      %s235 = ssub.s32 192, 192
      %236 = vsyncadd [#allocation4], %s235
      %s238 = sshll.u32 [#allocation7], 4
      %s239 = int_to_ptr.vmem [resolvable:$true] %s238
      %241 = dma.vmem_to_hbm [thread:$0]  %s239, 192, %s2, [#allocation4]
    $region21: #{tpu_custom_call.1} parent=1 // pred_fallthru
      _
    // Predicated region
    $region22: #{tpu_custom_call.1} parent=1 // pred_check
      _
    $region23: #{tpu_custom_call.1} parent=1 // pred_check_branch
      %243 = sbr.rel (0) target = $region25
    $region24: #{tpu_custom_call.1} parent=1 // pred_region
      %244 = dma.done [#allocation4], 192
    $region25: #{tpu_custom_call.1} parent=1 // pred_fallthru
      _
    %245 = vsyncpa [#allocation3], 1
    %246 = vsyncpa [#allocation6], 1
    %247 = vsyncpa [#allocation4], 1

</llo_original>
